<compile_context>
chip_gen: v7x
topology: tpu7x:2x2x1
jax: 0.10.0
libtpu: 0.0.40
codegen_flags: <defaults>
</compile_context>

<pallas_src>
import functools
import math

import jax
import jax.numpy as jnp
from jax import lax
from jax.experimental import pallas as pl
from jax.experimental.pallas import tpu as pltpu


# ----------------------------- VMEM budget -----------------------------

@functools.lru_cache(maxsize=None)
def _vmem_limit_bytes():
    # ~75% of physical VMEM: ~48 MiB on v7x (64 MiB/TC), ~96 MiB on v5e/v6e (128 MiB).
    try:
        cap = int(pltpu.get_tpu_info().vmem_capacity_bytes)
        return max(32 * 1024 * 1024, min((cap * 3) // 4, 112 * 1024 * 1024))
    except Exception:
        return 48 * 1024 * 1024  # conservative: fits every generation


# ----------------------------- Pallas kernels -----------------------------

def linear_kernel(x_ref, w_ref, b_ref, o_ref, acc_ref):
    # x_ref: (tm, tk); w_ref: (tk, tn) bf16; b_ref: (1, tn); o_ref/acc_ref: (tm, tn)
    @pl.when(pl.program_id(2) == 0)
    def _():
        acc_ref[...] = jnp.zeros_like(acc_ref)

    # bf16 MXU operands, f32 accumulation
    acc_ref[...] += jnp.dot(x_ref[...].astype(jnp.bfloat16), w_ref[...],
                            preferred_element_type=jnp.float32)

    @pl.when(pl.program_id(2) == pl.num_programs(2) - 1)
    def _():
        # bias broadcast only once, in the finalize branch (keeps the K loop pure MXU)
        o_ref[...] = (acc_ref[...] + b_ref[...].astype(jnp.float32)).astype(o_ref.dtype)


def attn_kernel(q_ref, k_ref, v_ref, o_ref, *, heads, dk, scale):
    # q_ref: (1, tq, heads*dk); k_ref/v_ref: (1, Sk, heads*dk); o_ref: (1, tq, heads*dk)
    # One (batch, head-group, q-tile) block per grid step; heads are contiguous dk-column slices.
    # TODO(synk): switch to lax.fori_loop + KV blocking for long Sk / many heads per group.
    outs = []
    for hh in range(heads):
        lo = hh * dk
        # fold 1/sqrt(dk) into the (tq, dk) q operand instead of the (tq, Sk) score matrix
        q = (q_ref[0, :, lo:lo + dk].astype(jnp.float32) * scale).astype(jnp.bfloat16)
        k = k_ref[0, :, lo:lo + dk].astype(jnp.bfloat16)
        v = v_ref[0, :, lo:lo + dk].astype(jnp.bfloat16)
        # q @ k^T via dot_general contracting last dims (no transposed copy of k); f32 accumulate
        s = lax.dot_general(q, k, (((1,), (1,)), ((), ())),
                            preferred_element_type=jnp.float32)            # (tq, Sk) f32
        m = jnp.max(s, axis=-1, keepdims=True)
        p = jnp.exp(s - m)                                                  # f32 softmax math
        l = jnp.sum(p, axis=-1, keepdims=True)                              # (tq, 1)
        o = lax.dot_general(p.astype(jnp.bfloat16), v, (((1,), (0,)), ((), ())),
                            preferred_element_type=jnp.float32)            # (tq, dk) f32
        # deferred normalization on the (tq, dk) result; approx=True -> EUP vrcp (free slot)
        outs.append(o * pl.reciprocal(l, approx=True))
    # single lane-dense store of the whole (tq, heads*dk) group (no per-head masked stores)
    o_ref[0] = jnp.concatenate(outs, axis=-1).astype(o_ref.dtype)


# ----------------------------- wrappers -----------------------------

def _pick_tile(dim, candidates):
    for c in candidates:
        if dim >= c and dim % c == 0:
            return c
    return dim  # full extent (always a legal block size)


def _pick_heads_per_block(h, dk):
    # smallest group of heads whose lane width is a multiple of 128 (lane-dense blocks)
    for hg in range(1, h + 1):
        if h % hg == 0 and (hg * dk) % 128 == 0:
            return hg
    return h


def linear(x2d, w, b, out_dtype=None):
    """y = x2d @ w + b with a tiled (M, N, K) grid, f32 accumulator, bf16 MXU feeds."""
    out_dtype = x2d.dtype if out_dtype is None else out_dtype
    M, K = x2d.shape
    N = w.shape[1]
    w = w.astype(jnp.bfloat16)  # bf16 weight stream: halves weight-tile HBM/VMEM bytes
    tm = _pick_tile(M, (512, 256, 128, 64, 32, 16, 8))
    tn = _pick_tile(N, (512, 256, 128))
    tk = _pick_tile(K, (512, 256, 128))
    grid = (M // tm, N // tn, K // tk)
    return pl.pallas_call(
        linear_kernel,
        out_shape=jax.ShapeDtypeStruct((M, N), out_dtype),
        grid=grid,
        in_specs=[
            pl.BlockSpec((tm, tk), lambda i, j, k: (i, k)),
            pl.BlockSpec((tk, tn), lambda i, j, k: (k, j)),
            pl.BlockSpec((1, tn), lambda i, j, k: (0, j)),
        ],
        out_specs=pl.BlockSpec((tm, tn), lambda i, j, k: (i, j)),
        scratch_shapes=[pltpu.VMEM((tm, tn), jnp.float32)],
        compiler_params=pltpu.CompilerParams(
            dimension_semantics=("parallel", "parallel", "arbitrary"),
            vmem_limit_bytes=_vmem_limit_bytes()),
    )(x2d, w, b.reshape(1, N))


def _attention(q_arr, k_arr, v_arr, *, h, dk, hg, q_off, k_off, v_off, out_dtype):
    """Scaled-dot-product attention over (batch, head-group, query-tile) grid.

    q_arr/k_arr/v_arr may all be the SAME fused [B, S, 3D] array; the per-head-group dk
    columns are selected purely via BlockSpec index_maps (no HBM transpose/slice).
    """
    B, Sq, _ = q_arr.shape
    Sk = k_arr.shape[1]
    ng = h // hg               # head groups
    gw = hg * dk               # lane width of one group block (multiple of 128 on fast path)
    tq = _pick_tile(Sq, (256, 128))   # query tiling keeps per-head scores at (tq, Sk)
    nq = Sq // tq
    scale = 1.0 / math.sqrt(dk)
    kernel = functools.partial(attn_kernel, heads=hg, dk=dk, scale=scale)
    return pl.pallas_call(
        kernel,
        out_shape=jax.ShapeDtypeStruct((B, Sq, h * dk), out_dtype),
        grid=(B, ng, nq),
        in_specs=[
            pl.BlockSpec((1, tq, gw), lambda b, g, qi: (b, qi, g + q_off)),
            pl.BlockSpec((1, Sk, gw), lambda b, g, qi: (b, 0, g + k_off)),
            pl.BlockSpec((1, Sk, gw), lambda b, g, qi: (b, 0, g + v_off)),
        ],
        out_specs=pl.BlockSpec((1, tq, gw), lambda b, g, qi: (b, qi, g)),
        compiler_params=pltpu.CompilerParams(
            dimension_semantics=("parallel", "parallel", "parallel"),
            vmem_limit_bytes=_vmem_limit_bytes()),
    )(q_arr, k_arr, v_arr)


def multi_headed_attention(query, key, value, params, h, mask=None):
    """Forward pass of MultiHeadedAttention (dropout = identity, eval mode)."""
    if mask is not None:
        # TODO(synk): optional attention mask not implemented (module default mask=None).
        raise NotImplementedError("mask is not supported in this Pallas port")
    B, Sq, D = query.shape
    dk = D // h

    if key is query and value is query:
        # Fused QKV: one matmul, one HBM read of the activation; bf16 intermediate.
        qkv = linear(query.reshape(B * Sq, D), params["w_qkv"], params["b_qkv"],
                     out_dtype=jnp.bfloat16).reshape(B, Sq, 3 * D)
        if D % 128 == 0:
            hg = _pick_heads_per_block(h, dk)
            ng = h // hg
            ctx = _attention(qkv, qkv, qkv, h=h, dk=dk, hg=hg,
                             q_off=0, k_off=ng, v_off=2 * ng, out_dtype=jnp.bfloat16)
        else:
            # TODO(synk): lane alignment not possible -> XLA column slices (extra HBM traffic)
            q, k, v = qkv[..., :D], qkv[..., D:2 * D], qkv[..., 2 * D:]
            ctx = _attention(q, k, v, h=h, dk=dk, hg=h,
                             q_off=0, k_off=0, v_off=0, out_dtype=jnp.bfloat16)
    else:
        # cross-attention: projections from weights pre-split at init (no per-call slices)
        Sk = key.shape[1]
        q = linear(query.reshape(B * Sq, D), params["wq"], params["bq"],
                   out_dtype=jnp.bfloat16).reshape(B, Sq, D)
        k = linear(key.reshape(B * Sk, D), params["wk"], params["bk"],
                   out_dtype=jnp.bfloat16).reshape(B, Sk, D)
        v = linear(value.reshape(B * Sk, D), params["wv"], params["bv"],
                   out_dtype=jnp.bfloat16).reshape(B, Sk, D)
        hg = _pick_heads_per_block(h, dk) if D % 128 == 0 else h
        ctx = _attention(q, k, v, h=h, dk=dk, hg=hg,
                         q_off=0, k_off=0, v_off=0, out_dtype=jnp.bfloat16)

    # output projection (tiled matmul), back to the caller's dtype
    return linear(ctx.reshape(B * Sq, D), params["wo"], params["bo"],
                  out_dtype=query.dtype).reshape(B, Sq, D)


# ----------------------------- parameter init -----------------------------

def init_mha_params(key, d_model):
    ks = jax.random.split(key, 8)
    s = 0.05
    wq = jax.random.normal(ks[0], (d_model, d_model), jnp.float32) * s
    wk = jax.random.normal(ks[1], (d_model, d_model), jnp.float32) * s
    wv = jax.random.normal(ks[2], (d_model, d_model), jnp.float32) * s
    wo = jax.random.normal(ks[3], (d_model, d_model), jnp.float32) * s
    bq = jax.random.normal(ks[4], (d_model,), jnp.float32) * s
    bk = jax.random.normal(ks[5], (d_model,), jnp.float32) * s
    bv = jax.random.normal(ks[6], (d_model,), jnp.float32) * s
    bo = jax.random.normal(ks[7], (d_model,), jnp.float32) * s
    return dict(
        wq=wq, wk=wk, wv=wv, wo=wo, bq=bq, bk=bk, bv=bv, bo=bo,
        # fused weights built once at init (self-attention fast path)
        w_qkv=jnp.concatenate([wq, wk, wv], axis=1),
        b_qkv=jnp.concatenate([bq, bk, bv]),
    )


# ----------------------------- pure-JAX reference -----------------------------

def _mha_ref(query, key, value, params, h):
    B, Sq, D = query.shape
    Sk = key.shape[1]
    dk = D // h
    q = (query @ params["wq"] + params["bq"]).reshape(B, Sq, h, dk).transpose(0, 2, 1, 3)
    k = (key @ params["wk"] + params["bk"]).reshape(B, Sk, h, dk).transpose(0, 2, 1, 3)
    v = (value @ params["wv"] + params["bv"]).reshape(B, Sk, h, dk).transpose(0, 2, 1, 3)
    s = jnp.einsum("bhqd,bhkd->bhqk", q, k) / math.sqrt(dk)
    p = jax.nn.softmax(s, axis=-1)
    o = jnp.einsum("bhqk,bhkd->bhqd", p, v).transpose(0, 2, 1, 3).reshape(B, Sq, D)
    return o @ params["wo"] + params["bo"]


# ----------------------------- main -----------------------------

if __name__ == "__main__":
    B, S, D_MODEL, H = 2, 8, 128, 2   # dk = 64, one lane-dense head group of 2*64 = 128

    root = jax.random.PRNGKey(0)
    k_x, k_p = jax.random.split(root)
    x = jax.random.normal(k_x, (B, S, D_MODEL), jnp.float32)
    params = init_mha_params(k_p, D_MODEL)

    out = multi_headed_attention(x, x, x, params, H)   # self-attention, mask=None
    out = jax.block_until_ready(out)

    with jax.default_matmul_precision("float32"):
        ref = _mha_ref(x, x, x, params, H)

    assert out.shape == (B, S, D_MODEL)
    err = jnp.max(jnp.abs(out - ref))
    # bf16 MXU operands / bf16 intermediates / approx reciprocal -> looser tolerance vs f32 ref
    assert jnp.allclose(out, ref, atol=3e-2, rtol=3e-2), f"max abs err {err}"

    print("KERNEL_OK")
</pallas_src>

<mosaic_0001>
module attributes {stable_mosaic.version = 11 : i64} {
  func.func @linear_kernel(%arg0: i32, %arg1: i32, %arg2: i32, %arg3: memref<16x128xf32, #tpu.memory_space<vmem>>, %arg4: memref<128x128xbf16, #tpu.memory_space<vmem>>, %arg5: memref<1x128xf32, #tpu.memory_space<vmem>>, %arg6: memref<16x128xbf16, #tpu.memory_space<vmem>>, %arg7: memref<16x128xf32, #tpu.memory_space<vmem>>) attributes {dimension_semantics = [#tpu.dimension_semantics<parallel>, #tpu.dimension_semantics<parallel>, #tpu.dimension_semantics<arbitrary>], iteration_bounds = array<i64: 1, 3, 1>, scalar_prefetch = 0 : i64, scratch_operands = 1 : i64, tpu.core_type = #tpu.core_type<tc>, window_params = [{transform_indices = @transform_0, window_bounds = array<i64: 16, 128>}, {transform_indices = @transform_1, window_bounds = array<i64: 128, 128>}, {transform_indices = @transform_2, window_bounds = array<i64: 1, 128>}, {transform_indices = @transform_3, window_bounds = array<i64: 16, 128>}]} {
    %c0_i32 = arith.constant 0 : i32
    %0 = arith.cmpi eq, %arg2, %c0_i32 : i32
    %1 = arith.extui %0 : i1 to i32
    %c0_i32_0 = arith.constant 0 : i32
    %2 = arith.cmpi ne, %1, %c0_i32_0 : i32
    scf.if %2 {
      %cst_10 = arith.constant 0.000000e+00 : f32
      %13 = vector.broadcast %cst_10 : f32 to vector<16x128xf32>
      %c0_11 = arith.constant 0 : index
      %c0_12 = arith.constant 0 : index
      %14 = vector.load %arg7[%c0_11, %c0_12] : memref<16x128xf32, #tpu.memory_space<vmem>>, vector<16x128xf32>
      tpu.vector_store %arg7[%c0_11, %c0_12], %13 {strides = array<i32>} : memref<16x128xf32, #tpu.memory_space<vmem>>, vector<16x128xf32>,
    } else {
    }
    %c0 = arith.constant 0 : index
    %c0_1 = arith.constant 0 : index
    %3 = vector.load %arg7[%c0, %c0_1] : memref<16x128xf32, #tpu.memory_space<vmem>>, vector<16x128xf32>
    %c0_2 = arith.constant 0 : index
    %c0_3 = arith.constant 0 : index
    %4 = vector.load %arg3[%c0_2, %c0_3] : memref<16x128xf32, #tpu.memory_space<vmem>>, vector<16x128xf32>
    %5 = arith.truncf %4 : vector<16x128xf32> to vector<16x128xbf16>
    %c0_4 = arith.constant 0 : index
    %c0_5 = arith.constant 0 : index
    %6 = vector.load %arg4[%c0_4, %c0_5] : memref<128x128xbf16, #tpu.memory_space<vmem>>, vector<128x128xbf16>
    %cst = arith.constant dense<0.000000e+00> : vector<16x128xf32>
    %7 = tpu.matmul %5, %6, %cst {dimension_numbers = #tpu.dot_dimension_numbers<[1], [0], [0], [1], [0, 0, 1, 1], [], []>} : vector<16x128xbf16>, vector<128x128xbf16>, vector<16x128xf32> -> vector<16x128xf32>
    %8 = arith.addf %3, %7 : vector<16x128xf32>
    %c0_6 = arith.constant 0 : index
    %c0_7 = arith.constant 0 : index
    %9 = vector.load %arg7[%c0_6, %c0_7] : memref<16x128xf32, #tpu.memory_space<vmem>>, vector<16x128xf32>
    tpu.vector_store %arg7[%c0_6, %c0_7], %8 {strides = array<i32>} : memref<16x128xf32, #tpu.memory_space<vmem>>, vector<16x128xf32>,
    %c0_i32_8 = arith.constant 0 : i32
    %10 = arith.cmpi eq, %arg2, %c0_i32_8 : i32
    %11 = arith.extui %10 : i1 to i32
    %c0_i32_9 = arith.constant 0 : i32
    %12 = arith.cmpi ne, %11, %c0_i32_9 : i32
    scf.if %12 {
      %c0_10 = arith.constant 0 : index
      %c0_11 = arith.constant 0 : index
      %13 = vector.load %arg7[%c0_10, %c0_11] : memref<16x128xf32, #tpu.memory_space<vmem>>, vector<16x128xf32>
      %c0_12 = arith.constant 0 : index
      %c0_13 = arith.constant 0 : index
      %14 = vector.load %arg5[%c0_12, %c0_13] : memref<1x128xf32, #tpu.memory_space<vmem>>, vector<1x128xf32>
      %15 = vector.broadcast %14 : vector<1x128xf32> to vector<16x128xf32>
      %16 = arith.addf %13, %15 : vector<16x128xf32>
      %17 = arith.truncf %16 : vector<16x128xf32> to vector<16x128xbf16>
      %c0_14 = arith.constant 0 : index
      %c0_15 = arith.constant 0 : index
      %18 = vector.load %arg6[%c0_14, %c0_15] : memref<16x128xbf16, #tpu.memory_space<vmem>>, vector<16x128xbf16>
      tpu.vector_store %arg6[%c0_14, %c0_15], %17 {strides = array<i32>} : memref<16x128xbf16, #tpu.memory_space<vmem>>, vector<16x128xbf16>,
    } else {
    }
    return
  }
  func.func @transform_0(%arg0: i32, %arg1: i32, %arg2: i32) -> (i32, i32) {
    %c0_i32 = arith.constant 0 : i32
    return %arg0, %arg2 : i32, i32
  }
  func.func @transform_1(%arg0: i32, %arg1: i32, %arg2: i32) -> (i32, i32) {
    %c0_i32 = arith.constant 0 : i32
    return %arg2, %arg1 : i32, i32
  }
  func.func @transform_2(%arg0: i32, %arg1: i32, %arg2: i32) -> (i32, i32) {
    %c0_i32 = arith.constant 0 : i32
    %c0_i32_0 = arith.constant 0 : i32
    return %c0_i32, %arg1 : i32, i32
  }
  func.func @transform_3(%arg0: i32, %arg1: i32, %arg2: i32) -> (i32, i32) {
    %c0_i32 = arith.constant 0 : i32
    return %arg0, %arg1 : i32, i32
  }
}

</mosaic_0001>

<llo_original>
// kernel: tpu_custom_call.1
$region0: #{tpu_custom_call.1}
  #allocation0 [shape = 'u32[]', space=smem, size = 0x4, offset = 0x4, fixed_abs, tag = 'smem constant byte address 0x4 - core index']
  #allocation1 [shape = 'u32[144,128]{1,0:T(1,128)}', space=vmem, size = 0x12000, scoped, tag = 'internal scratch']
  #allocation2 [shape = 'f32[16,128]{1,0:T(8,128)}', space=vmem, size = 0x2000, scoped, tag = 'scratch operand']
  %s0 = inlined_call_operand.hbm [shape: f32[16,128], index: 0, kind: input, shape index: {}]
  %s1 = inlined_call_operand.hbm [shape: bf16[128,384], index: 1, kind: input, shape index: {}]
  %s2 = inlined_call_operand.vmem [shape: f32[1,384], index: 2, kind: input, shape index: {}]
  %s3 = inlined_call_operand.hbm [shape: bf16[16,384], index: 3, kind: output, shape index: {}]
  %s4 = sld [smem:[#allocation0]]
  $region61: #{tpu_custom_call.1} parent=0
    _
  %s6 = ssub.s32 1, %s4
  %s7 = scalar_select 0, %s6, %s4
  $region1: #{tpu_custom_call.1} parent=0
    #allocation3 [shape = 'u8[8192]{0}', space=vmem, size = 0x2000, scoped, tag = 'input window, operand 0, single buffered']
    #allocation4 [shape = 's32[2]{0}', space=sflag, size = 0x8, scoped, tag = 'scoped memory for tpu_custom_call.1']
    #allocation5 [shape = 's32[2]{0}', space=sflag, size = 0x8, scoped, tag = 'scoped memory for tpu_custom_call.1']
    #allocation6 [shape = 'u8[65536]{0}', space=vmem, size = 0x10000, scoped, tag = 'input window, operand 1']
    #allocation7 [shape = 's32[2]{0}', space=sflag, size = 0x8, scoped, tag = 'scoped memory for tpu_custom_call.1']
    #allocation8 [shape = 'u8[8192]{0}', space=vmem, size = 0x2000, scoped, tag = 'output window, operand 0']
    %8 = vsyncpa [#allocation4], 0
    %9 = vsyncpa [#allocation7], 0
    %s10 = scalar_lea.sflag [#allocation7], 1
    %11 = vsyncpa %s10, 0
    %12 = vsyncpa [#allocation5], 0
    %s13 = scalar_lea.sflag [#allocation5], 1
    %14 = vsyncpa %s13, 0
    loop: start=0, step=1, limit=5
    $region2: #{tpu_custom_call.1} parent=1 // loop_pre_header
      _
    $region3: #{tpu_custom_call.1} parent=1 // loop_header
      %s16 = sphi 0, %s20
      %p17 = scmp.ge.s32.totalorder %s16, 5
      %s23 = sphi 0, %s42
      %s24 = sphi 0, %s38
      %s25 = sphi 0, %s34
      %s26 = sphi 0, %s23
      %s27 = sphi 0, %s24
      %s28 = sphi 0, %s25
      %s29 = sphi 0, %s26
      %s30 = sphi 0, %s27
      %s31 = sphi 0, %s28
      %s47 = sphi 0, %s49
      %s50 = sphi 0, %s47
      %s51 = sphi 0, %s50
      %s67 = sphi 0, %s51
      %s75 = sphi 0, %s77
      %s78 = sphi 0, %s75
      %s79 = sphi 0, %s78
      %s95 = sphi 0, %s79
      %s101 = sphi 0, %s103
      %s104 = sphi 0, %s101
      %s105 = sphi 0, %s104
      %s121 = sphi 0, %s105
      %s129 = sphi 0, %s131
      %s132 = sphi 0, %s129
      %s133 = sphi 0, %s132
      %s149 = sphi 0, %s133
    $region4: #{tpu_custom_call.1} parent=1 // loop_header_branch
      %19 = sbr.rel (%p17) target = $region8
    $region5: #{tpu_custom_call.1} parent=1 // loop_body
      %s21 = ssub.s32 %s16, 1
      %s22 = ssub.s32 %s16, 2
      %s32 = sadd.s32 1, %s25
      %p33 = scmp.ge.s32.totalorder %s32, 1
      %s34 = scalar_select %p33, 0, %s32
      %s35 = sadd.s32 1, %s24
      %s36 = scalar_select %p33, %s35, %s24
      %p37 = scmp.ge.s32.totalorder %s36, 3
      %s38 = scalar_select %p37, 0, %s36
      %s39 = sadd.s32 1, %s23
      %s40 = scalar_select %p37, %s39, %s23
      %p41 = scmp.ge.s32.totalorder %s40, 1
      %s42 = scalar_select %p41, 0, %s40
      %s43 = ssub.s32 %s23, %s42
      %s44 = ssub.s32 %s25, %s34
      %s45 = sor.u32 %s43, %s44
      %p46 = scmp.eq.s32.totalorder %s45, 0
      %s48 = sadd.s32 %s47, 1
      %s49 = scalar_select %p46, %s47, %s48
      %p52 = pneg %p46
      %p53 = scmp.eq.s32.totalorder %s16, 2
      %p54 = por %p52, %p53
      %p55 = scmp.ne.s32.totalorder %s47, %s50
      %p56 = scmp.eq.s32.totalorder %s16, 0
      %p57 = por %p55, %p56
      %p58 = scmp.ne.s32.totalorder %s47, %s50
      %p59 = scmp.eq.s32.totalorder %s21, 2
      %p60 = por %p58, %p59
      %p61 = scmp.ne.s32.totalorder %s50, %s51
      %p62 = scmp.eq.s32.totalorder %s21, 0
      %p63 = por %p61, %p62
      %p64 = scmp.ne.s32.totalorder %s50, %s51
      %p65 = scmp.eq.s32.totalorder %s22, 2
      %p66 = por %p64, %p65
      %p68 = scmp.ne.s32.totalorder %s51, %s67
      %p69 = scmp.eq.s32.totalorder %s22, 0
      %p70 = por %p68, %p69
      %s71 = ssub.s32 %s25, %s34
      %s72 = ssub.s32 %s24, %s38
      %s73 = sor.u32 %s71, %s72
      %p74 = scmp.eq.s32.totalorder %s73, 0
      %s76 = sadd.s32 %s75, 1
      %s77 = scalar_select %p74, %s75, %s76
      %p80 = pneg %p74
      %p81 = scmp.eq.s32.totalorder %s16, 2
      %p82 = por %p80, %p81
      %p83 = scmp.ne.s32.totalorder %s75, %s78
      %p84 = scmp.eq.s32.totalorder %s16, 0
      %p85 = por %p83, %p84
      %p86 = scmp.ne.s32.totalorder %s75, %s78
      %p87 = scmp.eq.s32.totalorder %s21, 2
      %p88 = por %p86, %p87
      %p89 = scmp.ne.s32.totalorder %s78, %s79
      %p90 = scmp.eq.s32.totalorder %s21, 0
      %p91 = por %p89, %p90
      %p92 = scmp.ne.s32.totalorder %s78, %s79
      %p93 = scmp.eq.s32.totalorder %s22, 2
      %p94 = por %p92, %p93
      %p96 = scmp.ne.s32.totalorder %s79, %s95
      %p97 = scmp.eq.s32.totalorder %s22, 0
      %p98 = por %p96, %p97
      %s99 = ssub.s32 %s24, %s38
      %p100 = scmp.eq.s32.totalorder %s99, 0
      %s102 = sadd.s32 %s101, 1
      %s103 = scalar_select %p100, %s101, %s102
      %p106 = pneg %p100
      %p107 = scmp.eq.s32.totalorder %s16, 2
      %p108 = por %p106, %p107
      %p109 = scmp.ne.s32.totalorder %s101, %s104
      %p110 = scmp.eq.s32.totalorder %s16, 0
      %p111 = por %p109, %p110
      %p112 = scmp.ne.s32.totalorder %s101, %s104
      %p113 = scmp.eq.s32.totalorder %s21, 2
      %p114 = por %p112, %p113
      %p115 = scmp.ne.s32.totalorder %s104, %s105
      %p116 = scmp.eq.s32.totalorder %s21, 0
      %p117 = por %p115, %p116
      %p118 = scmp.ne.s32.totalorder %s104, %s105
      %p119 = scmp.eq.s32.totalorder %s22, 2
      %p120 = por %p118, %p119
      %p122 = scmp.ne.s32.totalorder %s105, %s121
      %p123 = scmp.eq.s32.totalorder %s22, 0
      %p124 = por %p122, %p123
      %s125 = ssub.s32 %s23, %s42
      %s126 = ssub.s32 %s24, %s38
      %s127 = sor.u32 %s125, %s126
      %p128 = scmp.eq.s32.totalorder %s127, 0
      %s130 = sadd.s32 %s129, 1
      %s131 = scalar_select %p128, %s129, %s130
      %p134 = pneg %p128
      %p135 = scmp.eq.s32.totalorder %s16, 2
      %p136 = por %p134, %p135
      %p137 = scmp.ne.s32.totalorder %s129, %s132
      %p138 = scmp.eq.s32.totalorder %s16, 0
      %p139 = por %p137, %p138
      %p140 = scmp.ne.s32.totalorder %s129, %s132
      %p141 = scmp.eq.s32.totalorder %s21, 2
      %p142 = por %p140, %p141
      %p143 = scmp.ne.s32.totalorder %s132, %s133
      %p144 = scmp.eq.s32.totalorder %s21, 0
      %p145 = por %p143, %p144
      %p146 = scmp.ne.s32.totalorder %s132, %s133
      %p147 = scmp.eq.s32.totalorder %s22, 2
      %p148 = por %p146, %p147
      %p150 = scmp.ne.s32.totalorder %s133, %s149
      %p151 = scmp.eq.s32.totalorder %s22, 0
      %p152 = por %p150, %p151
      %p153 = scmp.le.s32.totalorder 1, %s16
      %p154 = scmp.lt.s32.totalorder %s16, 4
      %p155 = pnand %p153, %p154
      %p156 = pneg %p155
      // Predicated region
      $region9: #{tpu_custom_call.1} parent=5 // pred_check
        _
      $region10: #{tpu_custom_call.1} parent=5 // pred_check_branch
        %158 = sbr.rel (%p155) target = $region12
      $region11: #{tpu_custom_call.1} parent=5 // pred_region
        %s159 = ssub.s32 %s16, 1
        // Predicated region
        $region13: #{tpu_custom_call.1} parent=11 // pred_check
          %p160 = pneg %p63
        $region14: #{tpu_custom_call.1} parent=11 // pred_check_branch
          %162 = sbr.rel (%p160) target = $region16
        $region15: #{tpu_custom_call.1} parent=11 // pred_region
          %s163 = smul.u32 2, %s26
          %s165 = ssub.s32 256, 256
          %166 = vsyncadd [#allocation4], %s165
          %s167 = sadd.s32 %s28, %s163
          %s168 = smul.addr %s167, 128
          %s169 = scalar_lea.hbm %s0, %s168
          %s170 = sshll.u32 [#allocation3], 4
          %s171 = int_to_ptr.vmem [resolvable:$true] %s170
          %176 = dma.hbm_to_vmem [thread:$0]  %s169, 256, %s171, [#allocation4], 128, 128, 8
        $region16: #{tpu_custom_call.1} parent=11 // pred_fallthru
          _
      $region12: #{tpu_custom_call.1} parent=5 // pred_fallthru
        _
      %p177 = scmp.lt.s32.totalorder %s16, 3
      // Predicated region
      $region17: #{tpu_custom_call.1} parent=5 // pred_check
        %p178 = pneg %p177
      $region18: #{tpu_custom_call.1} parent=5 // pred_check_branch
        %180 = sbr.rel (%p178) target = $region20
      $region19: #{tpu_custom_call.1} parent=5 // pred_region
        // Predicated region
        $region21: #{tpu_custom_call.1} parent=19 // pred_check
          %p181 = pneg %p85
        $region22: #{tpu_custom_call.1} parent=19 // pred_check_branch
          %183 = sbr.rel (%p181) target = $region24
        $region23: #{tpu_custom_call.1} parent=19 // pred_region
          %s184 = sand.u32 %s75, 1
          %s185 = scalar_lea.sflag [#allocation7], %s184
          %s186 = sand.u32 %s75, 1
          %s187 = smul.addr %s186, 64
          %s188 = scalar_lea.vmem [#allocation6], %s187
          %s189 = smul.u32 16, %s25
          %s191 = ssub.s32 1024, 1024
          %192 = vsyncadd %s185, %s191
          %s193 = smul.addr %s189, 3
          %s194 = sadd.s32 %s24, %s193
          %s195 = smul.addr %s194, 64
          %s196 = scalar_lea.hbm %s1, %s195
          %s197 = sshll.u32 %s188, 4
          %s198 = int_to_ptr.vmem [resolvable:$true] %s197
          %203 = dma.hbm_to_vmem [thread:$0]  %s196, 1024, %s198, %s185, 192, 64, 4
        $region24: #{tpu_custom_call.1} parent=19 // pred_fallthru
          _
        // Predicated region
        $region25: #{tpu_custom_call.1} parent=19 // pred_check
          %p204 = pneg %p111
        $region26: #{tpu_custom_call.1} parent=19 // pred_check_branch
          %206 = sbr.rel (%p204) target = $region28
        $region27: #{tpu_custom_call.1} parent=19 // pred_region
          %p207 = scmp.lt.s32.totalorder %s24, 2
          %s208 = scalar_select %p207, %s24, 2
          %s209 = scalar_lea.vmem %s2, %s208
        $region28: #{tpu_custom_call.1} parent=19 // pred_fallthru
          _
      $region20: #{tpu_custom_call.1} parent=5 // pred_fallthru
        _
      %p210 = scmp.le.s32.totalorder 1, %s16
      %p211 = scmp.lt.s32.totalorder %s16, 4
      %p212 = pnand %p210, %p211
      %p213 = pneg %p212
      // Predicated region
      $region29: #{tpu_custom_call.1} parent=5 // pred_check
        _
      $region30: #{tpu_custom_call.1} parent=5 // pred_check_branch
        %215 = sbr.rel (%p212) target = $region32
      $region31: #{tpu_custom_call.1} parent=5 // pred_region
        %s216 = ssub.s32 %s16, 1
        // Predicated region
        $region33: #{tpu_custom_call.1} parent=31 // pred_check
          %p217 = pneg %p63
        $region34: #{tpu_custom_call.1} parent=31 // pred_check_branch
          %219 = sbr.rel (%p217) target = $region36
        $region35: #{tpu_custom_call.1} parent=31 // pred_region
          %220 = dma.done [#allocation4], 256
        $region36: #{tpu_custom_call.1} parent=31 // pred_fallthru
          _
        %s221 = sand.u32 %s78, 1
        %s222 = scalar_lea.sflag [#allocation7], %s221
        %s223 = sand.u32 %s78, 1
        %s224 = smul.addr %s223, 64
        %s225 = scalar_lea.vmem [#allocation6], %s224
        // Predicated region
        $region37: #{tpu_custom_call.1} parent=31 // pred_check
          %p226 = pneg %p91
        $region38: #{tpu_custom_call.1} parent=31 // pred_check_branch
          %228 = sbr.rel (%p226) target = $region40
        $region39: #{tpu_custom_call.1} parent=31 // pred_region
          %229 = dma.done %s222, 1024
        $region40: #{tpu_custom_call.1} parent=31 // pred_fallthru
          _
        %p230 = pneg %p63
        %p231 = pneg %p60
        %s232 = sand.u32 %s78, 1
        %s233 = scalar_lea.sflag [#allocation7], %s232
        %s234 = sand.u32 %s78, 1
        %s235 = smul.addr %s234, 64
        %s236 = scalar_lea.vmem [#allocation6], %s235
        %p237 = pneg %p91
        %p238 = pneg %p88
        %p239 = scmp.lt.s32.totalorder %s27, 2
        %s240 = scalar_select %p239, %s27, 2
        %s241 = scalar_lea.vmem %s2, %s240
        %p242 = pneg %p117
        %p243 = pneg %p114
        %p244 = pneg %p145
        %p245 = pneg %p142
        %s246 = sand.u32 %s132, 1
        %s247 = scalar_lea.sflag [#allocation5], %s246
        %s248 = sand.u32 %s132, 1
        %s249 = smul.addr %s248, 8
        %s250 = scalar_lea.vmem [#allocation8], %s249
        %s251 = smul.u32 2, %s26
        %s252 = smul.u32 16, %s28
        %p253 = scmp.lt.s32.totalorder %s27, 2
        %s254 = scalar_select %p253, %s27, 2
        %s255 = scalar_lea.vmem %s2, %s254
        %s256 = smul.u32 2, %s26
        %p258 = scmp.eq.s32.totalorder %s28, 0
        // Predicated region
        $region41: #{tpu_custom_call.1} parent=31 // pred_check
          %p259 = pneg %p258
        $region42: #{tpu_custom_call.1} parent=31 // pred_check_branch
          %261 = sbr.rel (%p259) target = $region44
        $region43: #{tpu_custom_call.1} parent=31 // pred_region
          %262 = vst [vmem:[#allocation2] sm:$0xff] 0.0
          %263 = vst [vmem:[#allocation2 + $0x8] sm:$0xff] 0.0
        $region44: #{tpu_custom_call.1} parent=31 // pred_fallthru
          _
        %v264 = vld [vmem:[#allocation2] sm:$0xff]
        %v265 = vld [vmem:[#allocation2 + $0x8] sm:$0xff]
        %v266 = vld [vmem:[#allocation3] sm:$0xff]
        %v267 = vld [vmem:[#allocation3 + $0x8] sm:$0xff]
        %v268 = vpack.c.bf16 %v267, %v266
        %v269 = vld [vmem:[%s225] sm:$0xf]
        %v270 = vld [vmem:[%s225 + $0x4] sm:$0xf]
        %v271 = vld [vmem:[%s225 + $0x8] sm:$0xf]
        %v272 = vld [vmem:[%s225 + $0xc] sm:$0xf]
        %v273 = vld [vmem:[%s225 + $0x10] sm:$0xf]
        %v274 = vld [vmem:[%s225 + $0x14] sm:$0xf]
        %v275 = vld [vmem:[%s225 + $0x18] sm:$0xf]
        %v276 = vld [vmem:[%s225 + $0x1c] sm:$0xf]
        %v277 = vld [vmem:[%s225 + $0x20] sm:$0xf]
        %v278 = vld [vmem:[%s225 + $0x24] sm:$0xf]
        %v279 = vld [vmem:[%s225 + $0x28] sm:$0xf]
        %v280 = vld [vmem:[%s225 + $0x2c] sm:$0xf]
        %v281 = vld [vmem:[%s225 + $0x30] sm:$0xf]
        %v282 = vld [vmem:[%s225 + $0x34] sm:$0xf]
        %v283 = vld [vmem:[%s225 + $0x38] sm:$0xf]
        %v284 = vld [vmem:[%s225 + $0x3c] sm:$0xf]
        %v301 = vunpack.c.l.b16 %v269
        %v302 = vunpack.c.l.b16 %v270
        %v303 = vunpack.c.l.b16 %v271
        %v304 = vunpack.c.l.b16 %v272
        %v305 = vunpack.c.l.b16 %v273
        %v306 = vunpack.c.l.b16 %v274
        %v307 = vunpack.c.l.b16 %v275
        %v308 = vunpack.c.l.b16 %v276
        %v309 = vunpack.c.l.b16 %v277
        %v310 = vunpack.c.l.b16 %v278
        %v311 = vunpack.c.l.b16 %v279
        %v312 = vunpack.c.l.b16 %v280
        %v313 = vunpack.c.l.b16 %v281
        %v314 = vunpack.c.l.b16 %v282
        %v315 = vunpack.c.l.b16 %v283
        %v316 = vunpack.c.l.b16 %v284
        %v317 = vpack.c.b16 %v302, %v301
        %v318 = vpack.c.b16 %v304, %v303
        %v319 = vpack.c.b16 %v306, %v305
        %v320 = vpack.c.b16 %v308, %v307
        %v321 = vpack.c.b16 %v310, %v309
        %v322 = vpack.c.b16 %v312, %v311
        %v323 = vpack.c.b16 %v314, %v313
        %v324 = vpack.c.b16 %v316, %v315
        %333 = vmatprep.subr.bf16.mxu0 0
        %334 = vmatpush1.bf16.msra.mxu0 %v317
        %335 = vmatprep.subr.bf16.mxu0 0
        %336 = vmatpush1.bf16.msra.mxu0 %v318
        %337 = vmatprep.subr.bf16.mxu0 0
        %338 = vmatpush1.bf16.msra.mxu0 %v319
        %339 = vmatprep.subr.bf16.mxu0 0
        %340 = vmatpush1.bf16.msra.mxu0 %v320
        %341 = vmatprep.subr.bf16.mxu0 0
        %342 = vmatpush1.bf16.msra.mxu0 %v321
        %343 = vmatprep.subr.bf16.mxu0 0
        %344 = vmatpush1.bf16.msra.mxu0 %v322
        %345 = vmatprep.subr.bf16.mxu0 0
        %346 = vmatpush1.bf16.msra.mxu0 %v323
        %347 = vmatprep.subr.bf16.mxu0 0
        %348 = vmatpush1.bf16.msra.mxu0 %v324
        %349 = vmatprep.subr.bf16.mxu0 0
        %350 = vmatpush1.bf16.msra.mxu0 0
        %351 = vmatprep.subr.bf16.mxu0 0
        %352 = vmatpush1.bf16.msra.mxu0 0
        %353 = vmatprep.subr.bf16.mxu0 0
        %354 = vmatpush1.bf16.msra.mxu0 0
        %355 = vmatprep.subr.bf16.mxu0 0
        %356 = vmatpush1.bf16.msra.mxu0 0
        %357 = vmatprep.subr.bf16.mxu0 0
        %358 = vmatpush1.bf16.msra.mxu0 0
        %359 = vmatprep.subr.bf16.mxu0 0
        %360 = vmatpush1.bf16.msra.mxu0 0
        %361 = vmatprep.subr.bf16.mxu0 0
        %362 = vmatpush1.bf16.msra.mxu0 0
        %363 = vmatprep.subr.bf16.mxu0 0
        %364 = vmatpush1.bf16.msra.mxu0 0
        %365 = vmatprep.mubr.bf16.mxu0 0
        %366 = vmatmul.mubr.bf16.gmra.mrb[0].mxu0 %v268
        %v367 = vpop.f32.mrb[0].mxu0
        %v368 = vadd.f32 0.0, %v367
        %v369 = vpop.f32.mrb[0].mxu0
        %v370 = vpop.f32.mrb[0].mxu0
        %v371 = vadd.f32 0.0, %v370
        %v372 = vpop.f32.mrb[0].mxu0
        %373 = vdwg.mxu0
        %v374 = vadd.f32 %v264, %v368
        %v375 = vadd.f32 %v265, %v371
        %376 = vst [vmem:[#allocation2] sm:$0xff] %v374
        %377 = vst [vmem:[#allocation2 + $0x8] sm:$0xff] %v375
        // Predicated region
        $region45: #{tpu_custom_call.1} parent=31 // pred_check
          %p378 = pneg %p258
        $region46: #{tpu_custom_call.1} parent=31 // pred_check_branch
          %380 = sbr.rel (%p378) target = $region48
        $region47: #{tpu_custom_call.1} parent=31 // pred_region
          %v381 = vld [vmem:[#allocation2] sm:$0xff]
          %v382 = vld [vmem:[#allocation2 + $0x8] sm:$0xff]
          %v383 = vld [vmem:[%s255] sm:$0x1]
          %v385 = vlaneseq
          %v386 = vshrl.u32 %v385, 7
          %v387 = vsub.s32 0, %v386
          %v388 = vrot.slane %v383, %v387
          %v390 = vadd.f32 %v381, %v388
          %v391 = vadd.f32 %v382, %v388
          %v392 = vpack.c.bf16 %v391, %v390
          %v394 = vunpack.c.l.b16 %v392
          %v395 = vunpack.c.h.b16 %v392
          %v396 = vpack.c.b16 %v394, %v394
          %v397 = vpack.c.b16 %v395, %v395
          %400 = vst [vmem:[%s250] sm:$0xf] %v396
          %401 = vst [vmem:[%s250 + $0x4] sm:$0xf] %v397
        $region48: #{tpu_custom_call.1} parent=31 // pred_fallthru
          _
        %s402 = sand.u32 %s132, 1
        %s403 = scalar_lea.sflag [#allocation5], %s402
        %s404 = sand.u32 %s132, 1
        %s405 = smul.addr %s404, 8
        %s406 = scalar_lea.vmem [#allocation8], %s405
        // Predicated region
        $region49: #{tpu_custom_call.1} parent=31 // pred_check
          %p407 = pneg %p142
        $region50: #{tpu_custom_call.1} parent=31 // pred_check_branch
          %409 = sbr.rel (%p407) target = $region52
        $region51: #{tpu_custom_call.1} parent=31 // pred_region
          %s410 = smul.u32 2, %s26
          %s412 = ssub.s32 128, 128
          %413 = vsyncadd %s403, %s412
          %s414 = smul.addr %s410, 3
          %s415 = sadd.s32 %s27, %s414
          %s416 = smul.addr %s415, 64
          %s417 = scalar_lea.hbm %s3, %s416
          %s418 = sshll.u32 %s406, 4
          %s419 = int_to_ptr.vmem [resolvable:$true] %s418
          %424 = dma.vmem_to_hbm [thread:$0]  %s419, 128, %s417, %s403, 64, 192, 4
        $region52: #{tpu_custom_call.1} parent=31 // pred_fallthru
          _
      $region32: #{tpu_custom_call.1} parent=5 // pred_fallthru
        _
      %p425 = scmp.le.s32.totalorder 2, %s16
      // Predicated region
      $region53: #{tpu_custom_call.1} parent=5 // pred_check
        %p426 = pneg %p425
      $region54: #{tpu_custom_call.1} parent=5 // pred_check_branch
        %428 = sbr.rel (%p426) target = $region56
      $region55: #{tpu_custom_call.1} parent=5 // pred_region
        %s429 = ssub.s32 %s16, 2
        // Predicated region
        $region57: #{tpu_custom_call.1} parent=55 // pred_check
          %p430 = pneg %p148
        $region58: #{tpu_custom_call.1} parent=55 // pred_check_branch
          %432 = sbr.rel (%p430) target = $region60
        $region59: #{tpu_custom_call.1} parent=55 // pred_region
          %s433 = sand.u32 %s133, 1
          %s434 = scalar_lea.sflag [#allocation5], %s433
          %s435 = sand.u32 %s133, 1
          %s436 = smul.addr %s435, 8
          %s437 = scalar_lea.vmem [#allocation8], %s436
          %438 = dma.done %s434, 128
        $region60: #{tpu_custom_call.1} parent=55 // pred_fallthru
          _
      $region56: #{tpu_custom_call.1} parent=5 // pred_fallthru
        _
    $region6: #{tpu_custom_call.1} parent=1 // loop_footer
      %s20 = sadd.s32 1, %s16
    $region7: #{tpu_custom_call.1} parent=1 // loop_footer_branch
      %15 = sbr.rel target = $region3
    $region8: #{tpu_custom_call.1} parent=1 // loop_exit
      _
    %439 = vsyncpa [#allocation4], 1
    %s440 = scalar_lea.sflag [#allocation4], 1
    %441 = vsyncpa %s440, 1
    %442 = vsyncpa [#allocation7], 1
    %s443 = scalar_lea.sflag [#allocation7], 1
    %444 = vsyncpa %s443, 1
    %445 = vsyncpa [#allocation5], 1
    %s446 = scalar_lea.sflag [#allocation5], 1
    %447 = vsyncpa %s446, 1

</llo_original>
